<compile_context>
chip_gen: v6e
topology: v6e:2x2x1
jax: 0.10.0
libtpu: 0.0.40
codegen_flags: <defaults>
</compile_context>

<pallas_src>
import functools

import jax
import jax.numpy as jnp
from jax import lax
from jax.experimental import pallas as pl
from jax.experimental.pallas import tpu as pltpu

BN_EPS = 1e-5  # PyTorch BatchNorm2d default


def _round_up(x, m):
    return (x + m - 1) // m * m


def _vmem_limit_bytes():
    # ~96 MiB on v5e/v6e (128 MiB physical), ~48 MiB on v7x (64 MiB physical).
    try:
        cap = pltpu.get_tpu_info().vmem_capacity_bytes
    except Exception:
        cap = 128 * 1024 * 1024
    return int(min((cap * 3) // 4, 96 * 1024 * 1024))


# --------------- pass 1: packed-tap GEMM + per-tile BN partial stats ---------------
def _deconv_gemm_kernel(lhs_ref, w_ref, y_ref, s_ref, q_ref, *, cout_p8):
    """One (sample, row-tile) per grid step.

    lhs_ref : (1, TH, Cpack)   bf16  packed taps (im2col rows) for this tile
    w_ref   : (Cpack, Cp)      bf16  packed, flipped ConvTranspose2d weight
    y_ref   : (1, cout_p8, TH) f32   conv output, channels in sublanes (NCHW-flat)
    s_ref   : (1, 1, Cp)       f32   per-tile channel sum
    q_ref   : (1, 1, Cp)       f32   per-tile channel sum of squares
    """
    acc = jnp.dot(lhs_ref[0], w_ref[...],
                  preferred_element_type=jnp.float32)           # (TH, Cp) f32
    # Store channel-unpadded and transposed: lane (fast) dim stays 128-dense (TH).
    y_ref[0] = acc.T[:cout_p8, :]
    # Single-pass BN partials; zero-padded rows / channels contribute exactly zero.
    s_ref[0] = jnp.sum(acc, axis=0, keepdims=True)
    q_ref[0] = jnp.sum(acc * acc, axis=0, keepdims=True)


# --------------- pass 2: normalize + ReLU (elementwise, parallel) ---------------
def _bn_relu_kernel(y_ref, sc_ref, sh_ref, o_ref):
    # y_ref: (1, cout_p8, TH) f32; sc/sh: (1, cout_p8, 1) broadcast over lanes.
    o_ref[0] = jnp.maximum(y_ref[0] * sc_ref[0] + sh_ref[0], 0.0)


def deconv_block_forward(x_nchw, weight_t, bias, gamma, beta, *, stride=1, padding=0):
    """Forward of DeConvBlock: ConvTranspose2d -> BatchNorm2d(train) -> ReLU.

    x_nchw   : (N, Cin, H, W)      PyTorch NCHW input
    weight_t : (Cin, Cout, K, K)   PyTorch ConvTranspose2d weight layout
    bias     : (Cout,)             ConvTranspose2d bias (cancels under train-mode BN)
    gamma, beta : (Cout,)          BatchNorm2d affine params
    returns  : (N, Cout, Hout, Wout), Hout = (H-1)*stride - 2*padding + K
    """
    # NOTE: the ConvTranspose bias cancels exactly in train-mode BN (y - mean(y)
    # is bias-free), so it is accepted for API parity but not used in compute.
    N, Cin, H, W = x_nchw.shape
    Cin_w, Cout, K, K2 = weight_t.shape
    assert Cin == Cin_w and K == K2
    s, p = stride, padding
    halo = K - 1 - p
    assert halo >= 0, "requires padding <= kernel_size - 1"

    Hd, Wd = (H - 1) * s + 1, (W - 1) * s + 1            # zero-inserted (dilated) size
    Hout, Wout = Hd + 2 * halo - K + 1, Wd + 2 * halo - K + 1
    HW = Hout * Wout
    Cp = _round_up(Cout, 128)                            # lane-dense GEMM out channels
    Cout_p8 = _round_up(Cout, 8)                         # sublane-dense stored channels
    Cpack = _round_up(K * K * Cin, 128)                  # packed-tap contraction depth

    # Spatial row tile: multiple of 128 (lane-dense transposed stores); keep >=4 steps.
    TH = 512
    while TH > 128 and -(-HW // TH) * N < 4:
        TH //= 2
    n_tiles = -(-HW // TH)
    HW_p = n_tiles * TH

    # ---- layout glue (tiny tensors only; big tensors are touched by kernels only) ----
    x = jnp.transpose(x_nchw, (0, 2, 3, 1)).astype(jnp.bfloat16)      # NCHW -> NHWC
    if s > 1:
        x_dil = jnp.zeros((N, Hd, Wd, Cin), jnp.bfloat16).at[:, ::s, ::s, :].set(x)
    else:
        x_dil = x
    x_pad = jnp.pad(x_dil, ((0, 0), (halo, halo), (halo, halo), (0, 0)))

    # Pack the K*K taps into the contraction dim (im2col of the tiny input): pass 1
    # then needs exactly one MXU matmul per tile, with K*K*Cin filling the 128 lanes.
    taps = [x_pad[:, kh:kh + Hout, kw:kw + Wout, :]
            for kh in range(K) for kw in range(K)]
    patches = jnp.concatenate(taps, axis=-1).reshape(N, HW, K * K * Cin)
    lhs = jnp.pad(patches, ((0, 0), (0, HW_p - HW), (0, Cpack - K * K * Cin)))

    # (Cin, Cout, K, K) --flip HW, swap IO--> (K, K, Cin, Cout) --> (K*K*Cin, Cout).
    w_flip = jnp.transpose(weight_t[:, :, ::-1, ::-1], (2, 3, 0, 1))
    w_mat = w_flip.reshape(K * K * Cin, Cout).astype(jnp.bfloat16)
    w_mat = jnp.pad(w_mat, ((0, Cpack - K * K * Cin), (0, Cp - Cout)))

    g_p = jnp.pad(gamma.astype(jnp.float32), (0, Cp - Cout))
    be_p = jnp.pad(beta.astype(jnp.float32), (0, Cp - Cout))

    vmem_limit = _vmem_limit_bytes()

    # ---------------- pass 1: conv GEMM + partial BN stats ----------------
    kern = functools.partial(_deconv_gemm_kernel, cout_p8=Cout_p8)
    flops = 2 * N * HW * (K * K * Cin) * Cout            # true (unpadded) work
    bytes_accessed = (N * HW_p * Cpack * 2 + Cpack * Cp * 2
                      + N * Cout_p8 * HW_p * 4 + 2 * N * n_tiles * Cp * 4)
    conv_out, psum, psq = pl.pallas_call(
        kern,
        grid=(N, n_tiles),
        in_specs=[
            pl.BlockSpec((1, TH, Cpack), lambda n, t: (n, t, 0)),
            pl.BlockSpec((Cpack, Cp), lambda n, t: (0, 0)),
        ],
        out_specs=(
            pl.BlockSpec((1, Cout_p8, TH), lambda n, t: (n, 0, t)),
            pl.BlockSpec((1, 1, Cp), lambda n, t: (n * n_tiles + t, 0, 0)),
            pl.BlockSpec((1, 1, Cp), lambda n, t: (n * n_tiles + t, 0, 0)),
        ),
        out_shape=(
            jax.ShapeDtypeStruct((N, Cout_p8, HW_p), jnp.float32),
            jax.ShapeDtypeStruct((N * n_tiles, 1, Cp), jnp.float32),
            jax.ShapeDtypeStruct((N * n_tiles, 1, Cp), jnp.float32),
        ),
        compiler_params=pltpu.CompilerParams(
            dimension_semantics=("parallel", "parallel"),
            vmem_limit_bytes=vmem_limit),
        cost_estimate=pl.CostEstimate(flops=flops, transcendentals=0,
                                      bytes_accessed=bytes_accessed),
    )(lhs, w_mat)

    # ---- tiny cross-tile reduction + BN coefficients (train-mode batch stats) ----
    count = jnp.float32(N * HW)
    tot_s = jnp.sum(psum, axis=(0, 1))                   # (Cp,)
    tot_q = jnp.sum(psq, axis=(0, 1))                    # (Cp,)
    mean = tot_s / count
    var = jnp.maximum(tot_q / count - mean * mean, 0.0)  # biased (train mode)
    inv = lax.rsqrt(var + BN_EPS)
    scale = (g_p * inv)[:Cout_p8].reshape(1, Cout_p8, 1)
    shift = (be_p - mean * g_p * inv)[:Cout_p8].reshape(1, Cout_p8, 1)

    # ---------------- pass 2: normalize + ReLU ----------------
    out_p = pl.pallas_call(
        _bn_relu_kernel,
        grid=(N, n_tiles),
        in_specs=[
            pl.BlockSpec((1, Cout_p8, TH), lambda n, t: (n, 0, t)),
            pl.BlockSpec((1, Cout_p8, 1), lambda n, t: (0, 0, 0)),
            pl.BlockSpec((1, Cout_p8, 1), lambda n, t: (0, 0, 0)),
        ],
        out_specs=pl.BlockSpec((1, Cout_p8, TH), lambda n, t: (n, 0, t)),
        out_shape=jax.ShapeDtypeStruct((N, Cout_p8, HW_p), jnp.float32),
        compiler_params=pltpu.CompilerParams(
            dimension_semantics=("parallel", "parallel"),
            vmem_limit_bytes=vmem_limit),
        cost_estimate=pl.CostEstimate(
            flops=2 * N * Cout_p8 * HW_p, transcendentals=0,
            bytes_accessed=2 * N * Cout_p8 * HW_p * 4),
    )(conv_out, scale, shift)

    # Crop channel / row padding; layout is already NCHW-flat -> no transpose pass.
    return out_p[:, :Cout, :HW].reshape(N, Cout, Hout, Wout)


def _reference(x_nchw, weight_t, bias, gamma, beta, *, stride=1, padding=0):
    """Pure-JAX reference (same bf16 GEMM operands / f32 accumulation as the kernel)."""
    K = weight_t.shape[2]
    Cout = weight_t.shape[1]
    x = jnp.transpose(x_nchw, (0, 2, 3, 1)).astype(jnp.bfloat16)
    w_hwio = jnp.transpose(weight_t[:, :, ::-1, ::-1], (2, 3, 0, 1)).astype(jnp.bfloat16)
    pad = K - 1 - padding
    y = lax.conv_general_dilated(
        x, w_hwio, window_strides=(1, 1),
        padding=[(pad, pad), (pad, pad)],
        lhs_dilation=(stride, stride),
        dimension_numbers=("NHWC", "HWIO", "NHWC"),
        preferred_element_type=jnp.float32,
    ) + bias.reshape(1, 1, 1, Cout).astype(jnp.float32)
    mean = jnp.mean(y, axis=(0, 1, 2), keepdims=True)
    var = jnp.mean((y - mean) ** 2, axis=(0, 1, 2), keepdims=True)
    y = (y - mean) * lax.rsqrt(var + BN_EPS) * gamma.reshape(1, 1, 1, Cout) \
        + beta.reshape(1, 1, 1, Cout)
    return jnp.transpose(jnp.maximum(y, 0.0), (0, 3, 1, 2))


if __name__ == "__main__":
    key = jax.random.PRNGKey(0)
    k_x, k_w, k_b, k_g, k_be = jax.random.split(key, 5)

    # Shapes consistent with the module: DeConvBlock(4, 8, kernel_size=3)
    N, Cin, Cout, H, W, K = 2, 4, 8, 16, 16, 3

    x = jax.random.normal(k_x, (N, Cin, H, W), jnp.float32)
    weight_t = 0.1 * jax.random.normal(k_w, (Cin, Cout, K, K), jnp.float32)
    bias = 0.1 * jax.random.normal(k_b, (Cout,), jnp.float32)
    gamma = 1.0 + 0.1 * jax.random.normal(k_g, (Cout,), jnp.float32)
    beta = 0.1 * jax.random.normal(k_be, (Cout,), jnp.float32)

    fwd = jax.jit(deconv_block_forward, static_argnames=("stride", "padding"))

    # Default config: kernel_size=3, stride=1, padding=0.
    out = jax.block_until_ready(fwd(x, weight_t, bias, gamma, beta, stride=1, padding=0))
    assert out.shape == (N, Cout, H + K - 1, W + K - 1), out.shape
    ref = _reference(x, weight_t, bias, gamma, beta, stride=1, padding=0)
    err = float(jnp.max(jnp.abs(out - ref)))
    assert err < 2e-3, f"max abs err {err}"

    # Strided / padded variant (exercises the dilation path).
    out2 = jax.block_until_ready(fwd(x, weight_t, bias, gamma, beta, stride=2, padding=1))
    Hout2 = (H - 1) * 2 - 2 * 1 + K
    assert out2.shape == (N, Cout, Hout2, Hout2), out2.shape
    ref2 = _reference(x, weight_t, bias, gamma, beta, stride=2, padding=1)
    err2 = float(jnp.max(jnp.abs(out2 - ref2)))
    assert err2 < 2e-3, f"max abs err {err2}"

    print("KERNEL_OK")
</pallas_src>

<mosaic_0001>
module attributes {stable_mosaic.version = 11 : i64} {
  func.func @_deconv_gemm_kernel(%arg0: i32, %arg1: i32, %arg2: memref<1x256x128xbf16, #tpu.memory_space<vmem>>, %arg3: memref<128x128xbf16, #tpu.memory_space<vmem>>, %arg4: memref<1x8x256xf32, #tpu.memory_space<vmem>>, %arg5: memref<1x1x128xf32, #tpu.memory_space<vmem>>, %arg6: memref<1x1x128xf32, #tpu.memory_space<vmem>>) attributes {dimension_semantics = [#tpu.dimension_semantics<parallel>, #tpu.dimension_semantics<parallel>], iteration_bounds = array<i64: 2, 2>, scalar_prefetch = 0 : i64, scratch_operands = 0 : i64, tpu.core_type = #tpu.core_type<tc>, window_params = [{transform_indices = @transform_0, window_bounds = array<i64: 1, 256, 128>}, {pipeline_mode = #tpu.pipeline_mode<synchronous>, transform_indices = @transform_1, window_bounds = array<i64: 128, 128>}, {transform_indices = @transform_2, window_bounds = array<i64: 1, 8, 256>}, {transform_indices = @transform_3, window_bounds = array<i64: 1, 1, 128>}, {transform_indices = @transform_4, window_bounds = array<i64: 1, 1, 128>}]} {
    %c0 = arith.constant 0 : index
    %c0_0 = arith.constant 0 : index
    %c0_1 = arith.constant 0 : index
    %0 = vector.load %arg2[%c0, %c0_0, %c0_1] : memref<1x256x128xbf16, #tpu.memory_space<vmem>>, vector<1x256x128xbf16>
    %1 = vector.shape_cast %0 : vector<1x256x128xbf16> to vector<256x128xbf16>
    %c0_2 = arith.constant 0 : index
    %c0_3 = arith.constant 0 : index
    %2 = vector.load %arg3[%c0_2, %c0_3] : memref<128x128xbf16, #tpu.memory_space<vmem>>, vector<128x128xbf16>
    %cst = arith.constant dense<0.000000e+00> : vector<256x128xf32>
    %3 = tpu.matmul %1, %2, %cst {dimension_numbers = #tpu.dot_dimension_numbers<[1], [0], [0], [1], [0, 0, 1, 1], [], []>} : vector<256x128xbf16>, vector<128x128xbf16>, vector<256x128xf32> -> vector<256x128xf32>
    %4 = tpu.transpose %3, [1, 0] : vector<256x128xf32> -> vector<128x256xf32>
    %5 = vector.extract_strided_slice %4 {offsets = [0, 0], sizes = [8, 256], strides = [1, 1]} : vector<128x256xf32> to vector<8x256xf32>
    %c0_4 = arith.constant 0 : index
    %c0_5 = arith.constant 0 : index
    %c0_6 = arith.constant 0 : index
    %6 = vector.load %arg4[%c0_4, %c0_5, %c0_6] : memref<1x8x256xf32, #tpu.memory_space<vmem>>, vector<1x8x256xf32>
    %7 = vector.shape_cast %6 : vector<1x8x256xf32> to vector<8x256xf32>
    %8 = vector.shape_cast %5 : vector<8x256xf32> to vector<1x8x256xf32>
    tpu.vector_store %arg4[%c0_4, %c0_5, %c0_6], %8 {strides = array<i32>} : memref<1x8x256xf32, #tpu.memory_space<vmem>>, vector<1x8x256xf32>,
    %cst_7 = arith.constant dense<0.000000e+00> : vector<128xf32>
    %9 = vector.multi_reduction <add>, %3, %cst_7 [0] : vector<256x128xf32> to vector<128xf32>
    %10 = vector.shape_cast %9 : vector<128xf32> to vector<1x128xf32>
    %c0_8 = arith.constant 0 : index
    %c0_9 = arith.constant 0 : index
    %c0_10 = arith.constant 0 : index
    %11 = vector.load %arg5[%c0_8, %c0_9, %c0_10] : memref<1x1x128xf32, #tpu.memory_space<vmem>>, vector<1x1x128xf32>
    %12 = vector.shape_cast %11 : vector<1x1x128xf32> to vector<1x128xf32>
    %13 = vector.shape_cast %10 : vector<1x128xf32> to vector<1x1x128xf32>
    tpu.vector_store %arg5[%c0_8, %c0_9, %c0_10], %13 {strides = array<i32>} : memref<1x1x128xf32, #tpu.memory_space<vmem>>, vector<1x1x128xf32>,
    %14 = arith.mulf %3, %3 : vector<256x128xf32>
    %cst_11 = arith.constant dense<0.000000e+00> : vector<128xf32>
    %15 = vector.multi_reduction <add>, %14, %cst_11 [0] : vector<256x128xf32> to vector<128xf32>
    %16 = vector.shape_cast %15 : vector<128xf32> to vector<1x128xf32>
    %c0_12 = arith.constant 0 : index
    %c0_13 = arith.constant 0 : index
    %c0_14 = arith.constant 0 : index
    %17 = vector.load %arg6[%c0_12, %c0_13, %c0_14] : memref<1x1x128xf32, #tpu.memory_space<vmem>>, vector<1x1x128xf32>
    %18 = vector.shape_cast %17 : vector<1x1x128xf32> to vector<1x128xf32>
    %19 = vector.shape_cast %16 : vector<1x128xf32> to vector<1x1x128xf32>
    tpu.vector_store %arg6[%c0_12, %c0_13, %c0_14], %19 {strides = array<i32>} : memref<1x1x128xf32, #tpu.memory_space<vmem>>, vector<1x1x128xf32>,
    return
  }
  func.func @transform_0(%arg0: i32, %arg1: i32) -> (i32, i32, i32) {
    %c0_i32 = arith.constant 0 : i32
    %c0_i32_0 = arith.constant 0 : i32
    return %arg0, %arg1, %c0_i32 : i32, i32, i32
  }
  func.func @transform_1(%arg0: i32, %arg1: i32) -> (i32, i32) {
    %c0_i32 = arith.constant 0 : i32
    %c0_i32_0 = arith.constant 0 : i32
    %c0_i32_1 = arith.constant 0 : i32
    return %c0_i32, %c0_i32_0 : i32, i32
  }
  func.func @transform_2(%arg0: i32, %arg1: i32) -> (i32, i32, i32) {
    %c0_i32 = arith.constant 0 : i32
    %c0_i32_0 = arith.constant 0 : i32
    return %arg0, %c0_i32, %arg1 : i32, i32, i32
  }
  func.func @transform_3(%arg0: i32, %arg1: i32) -> (i32, i32, i32) {
    %c2_i32 = arith.constant 2 : i32
    %0 = arith.muli %arg0, %c2_i32 : i32
    %1 = arith.addi %0, %arg1 : i32
    %c0_i32 = arith.constant 0 : i32
    %c0_i32_0 = arith.constant 0 : i32
    %c0_i32_1 = arith.constant 0 : i32
    return %1, %c0_i32, %c0_i32_0 : i32, i32, i32
  }
  func.func @transform_4(%arg0: i32, %arg1: i32) -> (i32, i32, i32) {
    %c2_i32 = arith.constant 2 : i32
    %0 = arith.muli %arg0, %c2_i32 : i32
    %1 = arith.addi %0, %arg1 : i32
    %c0_i32 = arith.constant 0 : i32
    %c0_i32_0 = arith.constant 0 : i32
    %c0_i32_1 = arith.constant 0 : i32
    return %1, %c0_i32, %c0_i32_0 : i32, i32, i32
  }
}

module attributes {stable_mosaic.version = 11 : i64} {
  func.func @_bn_relu_kernel(%arg0: i32, %arg1: i32, %arg2: memref<1x8x256xf32, #tpu.memory_space<vmem>>, %arg3: memref<1x8x1xf32, #tpu.memory_space<vmem>>, %arg4: memref<1x8x1xf32, #tpu.memory_space<vmem>>, %arg5: memref<1x8x256xf32, #tpu.memory_space<vmem>>) attributes {dimension_semantics = [#tpu.dimension_semantics<parallel>, #tpu.dimension_semantics<parallel>], iteration_bounds = array<i64: 2, 2>, scalar_prefetch = 0 : i64, scratch_operands = 0 : i64, tpu.core_type = #tpu.core_type<tc>, window_params = [{transform_indices = @transform_0, window_bounds = array<i64: 1, 8, 256>}, {pipeline_mode = #tpu.pipeline_mode<synchronous>, transform_indices = @transform_1, window_bounds = array<i64: 1, 8, 1>}, {pipeline_mode = #tpu.pipeline_mode<synchronous>, transform_indices = @transform_2, window_bounds = array<i64: 1, 8, 1>}, {transform_indices = @transform_3, window_bounds = array<i64: 1, 8, 256>}]} {
    %c0 = arith.constant 0 : index
    %c0_0 = arith.constant 0 : index
    %c0_1 = arith.constant 0 : index
    %0 = vector.load %arg2[%c0, %c0_0, %c0_1] : memref<1x8x256xf32, #tpu.memory_space<vmem>>, vector<1x8x256xf32>
    %1 = vector.shape_cast %0 : vector<1x8x256xf32> to vector<8x256xf32>
    %c0_2 = arith.constant 0 : index
    %c0_3 = arith.constant 0 : index
    %c0_4 = arith.constant 0 : index
    %2 = vector.load %arg3[%c0_2, %c0_3, %c0_4] : memref<1x8x1xf32, #tpu.memory_space<vmem>>, vector<1x8x1xf32>
    %3 = vector.shape_cast %2 : vector<1x8x1xf32> to vector<8x1xf32>
    %4 = vector.broadcast %3 : vector<8x1xf32> to vector<8x256xf32>
    %5 = arith.mulf %1, %4 : vector<8x256xf32>
    %c0_5 = arith.constant 0 : index
    %c0_6 = arith.constant 0 : index
    %c0_7 = arith.constant 0 : index
    %6 = vector.load %arg4[%c0_5, %c0_6, %c0_7] : memref<1x8x1xf32, #tpu.memory_space<vmem>>, vector<1x8x1xf32>
    %7 = vector.shape_cast %6 : vector<1x8x1xf32> to vector<8x1xf32>
    %8 = vector.broadcast %7 : vector<8x1xf32> to vector<8x256xf32>
    %9 = arith.addf %5, %8 : vector<8x256xf32>
    %cst = arith.constant 0.000000e+00 : f32
    %10 = vector.broadcast %cst : f32 to vector<8x256xf32>
    %11 = arith.maximumf %9, %10 : vector<8x256xf32>
    %c0_8 = arith.constant 0 : index
    %c0_9 = arith.constant 0 : index
    %c0_10 = arith.constant 0 : index
    %12 = vector.load %arg5[%c0_8, %c0_9, %c0_10] : memref<1x8x256xf32, #tpu.memory_space<vmem>>, vector<1x8x256xf32>
    %13 = vector.shape_cast %12 : vector<1x8x256xf32> to vector<8x256xf32>
    %14 = vector.shape_cast %11 : vector<8x256xf32> to vector<1x8x256xf32>
    tpu.vector_store %arg5[%c0_8, %c0_9, %c0_10], %14 {strides = array<i32>} : memref<1x8x256xf32, #tpu.memory_space<vmem>>, vector<1x8x256xf32>,
    return
  }
  func.func @transform_0(%arg0: i32, %arg1: i32) -> (i32, i32, i32) {
    %c0_i32 = arith.constant 0 : i32
    %c0_i32_0 = arith.constant 0 : i32
    return %arg0, %c0_i32, %arg1 : i32, i32, i32
  }
  func.func @transform_1(%arg0: i32, %arg1: i32) -> (i32, i32, i32) {
    %c0_i32 = arith.constant 0 : i32
    %c0_i32_0 = arith.constant 0 : i32
    %c0_i32_1 = arith.constant 0 : i32
    %c0_i32_2 = arith.constant 0 : i32
    return %c0_i32, %c0_i32_0, %c0_i32_1 : i32, i32, i32
  }
  func.func @transform_2(%arg0: i32, %arg1: i32) -> (i32, i32, i32) {
    %c0_i32 = arith.constant 0 : i32
    %c0_i32_0 = arith.constant 0 : i32
    %c0_i32_1 = arith.constant 0 : i32
    %c0_i32_2 = arith.constant 0 : i32
    return %c0_i32, %c0_i32_0, %c0_i32_1 : i32, i32, i32
  }
  func.func @transform_3(%arg0: i32, %arg1: i32) -> (i32, i32, i32) {
    %c0_i32 = arith.constant 0 : i32
    %c0_i32_0 = arith.constant 0 : i32
    return %arg0, %c0_i32, %arg1 : i32, i32, i32
  }
}

</mosaic_0001>

<llo_original>
// kernel: deconv_block_forward.3
$region0: #{deconv_block_forward.3}
  #allocation0 [shape = 'u32[]', space=smem, size = 0x4, offset = 0x4, fixed_abs, tag = 'smem constant byte address 0x4 - core index']
  #allocation1 [shape = 'u32[144,128]{1,0:T(1,128)}', space=vmem, size = 0x12000, scoped, tag = 'internal scratch']
  %s0 = inlined_call_operand.vmem [shape: f32[2,8,512], index: 0, kind: input, shape index: {}]
  %s1 = inlined_call_operand.vmem [shape: f32[1,8,1], index: 1, kind: input, shape index: {}]
  %s2 = inlined_call_operand.vmem [shape: f32[1,8,1], index: 2, kind: input, shape index: {}]
  %s3 = inlined_call_operand.vmem [shape: f32[2,8,512], index: 3, kind: output, shape index: {}]
  %s4 = sld [smem:[#allocation0]]
  $region45: #{deconv_block_forward.3} parent=0
    _
  %s6 = ssub.s32 1, %s4
  %s7 = scalar_select 0, %s6, %s4
  loop: start=0, step=1, limit=6
  $region2: #{deconv_block_forward.3} parent=0 // loop_pre_header
    _
  $region3: #{deconv_block_forward.3} parent=0 // loop_header
    %s9 = sphi 0, %s13
    %p10 = scmp.ge.s32.totalorder %s9, 6
    %s16 = sphi 0, %s28
    %s17 = sphi 0, %s24
    %s18 = sphi 0, %s16
    %s19 = sphi 0, %s17
    %s20 = sphi 0, %s18
    %s21 = sphi 0, %s19
    %s33 = sphi 0, %s35
    %s36 = sphi 0, %s33
    %s37 = sphi 0, %s36
    %s53 = sphi 0, %s37
    %s57 = sphi 0, %s57
    %s59 = sphi 0, %s57
    %s60 = sphi 0, %s59
    %s74 = sphi 0, %s60
    %s78 = sphi 0, %s78
    %s80 = sphi 0, %s78
    %s81 = sphi 0, %s80
    %s95 = sphi 0, %s81
    %s103 = sphi 0, %s105
    %s106 = sphi 0, %s103
    %s107 = sphi 0, %s106
    %s123 = sphi 0, %s107
  $region4: #{deconv_block_forward.3} parent=0 // loop_header_branch
    %12 = sbr.rel (%p10) target = $region8
  $region5: #{deconv_block_forward.3} parent=0 // loop_body
    %s14 = ssub.s32 %s9, 1
    %s15 = ssub.s32 %s9, 2
    %s22 = sadd.s32 1, %s17
    %p23 = scmp.ge.s32.totalorder %s22, 2
    %s24 = scalar_select %p23, 0, %s22
    %s25 = sadd.s32 1, %s16
    %s26 = scalar_select %p23, %s25, %s16
    %p27 = scmp.ge.s32.totalorder %s26, 2
    %s28 = scalar_select %p27, 0, %s26
    %s29 = ssub.s32 %s16, %s28
    %s30 = ssub.s32 %s17, %s24
    %s31 = sor.u32 %s29, %s30
    %p32 = scmp.eq.s32.totalorder %s31, 0
    %s34 = sadd.s32 %s33, 1
    %s35 = scalar_select %p32, %s33, %s34
    %p38 = pneg %p32
    %p39 = scmp.eq.s32.totalorder %s9, 3
    %p40 = por %p38, %p39
    %p41 = scmp.ne.s32.totalorder %s33, %s36
    %p42 = scmp.eq.s32.totalorder %s9, 0
    %p43 = por %p41, %p42
    %p44 = scmp.ne.s32.totalorder %s33, %s36
    %p45 = scmp.eq.s32.totalorder %s14, 3
    %p46 = por %p44, %p45
    %p47 = scmp.ne.s32.totalorder %s36, %s37
    %p48 = scmp.eq.s32.totalorder %s14, 0
    %p49 = por %p47, %p48
    %p50 = scmp.ne.s32.totalorder %s36, %s37
    %p51 = scmp.eq.s32.totalorder %s15, 3
    %p52 = por %p50, %p51
    %p54 = scmp.ne.s32.totalorder %s37, %s53
    %p55 = scmp.eq.s32.totalorder %s15, 0
    %p56 = por %p54, %p55
    %s58 = sadd.s32 %s57, 1
    %p61 = scmp.eq.s32.totalorder %s9, 3
    %p62 = scmp.ne.s32.totalorder %s57, %s59
    %p63 = scmp.eq.s32.totalorder %s9, 0
    %p64 = por %p62, %p63
    %p65 = scmp.ne.s32.totalorder %s57, %s59
    %p66 = scmp.eq.s32.totalorder %s14, 3
    %p67 = por %p65, %p66
    %p68 = scmp.ne.s32.totalorder %s59, %s60
    %p69 = scmp.eq.s32.totalorder %s14, 0
    %p70 = por %p68, %p69
    %p71 = scmp.ne.s32.totalorder %s59, %s60
    %p72 = scmp.eq.s32.totalorder %s15, 3
    %p73 = por %p71, %p72
    %p75 = scmp.ne.s32.totalorder %s60, %s74
    %p76 = scmp.eq.s32.totalorder %s15, 0
    %p77 = por %p75, %p76
    %s79 = sadd.s32 %s78, 1
    %p82 = scmp.eq.s32.totalorder %s9, 3
    %p83 = scmp.ne.s32.totalorder %s78, %s80
    %p84 = scmp.eq.s32.totalorder %s9, 0
    %p85 = por %p83, %p84
    %p86 = scmp.ne.s32.totalorder %s78, %s80
    %p87 = scmp.eq.s32.totalorder %s14, 3
    %p88 = por %p86, %p87
    %p89 = scmp.ne.s32.totalorder %s80, %s81
    %p90 = scmp.eq.s32.totalorder %s14, 0
    %p91 = por %p89, %p90
    %p92 = scmp.ne.s32.totalorder %s80, %s81
    %p93 = scmp.eq.s32.totalorder %s15, 3
    %p94 = por %p92, %p93
    %p96 = scmp.ne.s32.totalorder %s81, %s95
    %p97 = scmp.eq.s32.totalorder %s15, 0
    %p98 = por %p96, %p97
    %s99 = ssub.s32 %s16, %s28
    %s100 = ssub.s32 %s17, %s24
    %s101 = sor.u32 %s99, %s100
    %p102 = scmp.eq.s32.totalorder %s101, 0
    %s104 = sadd.s32 %s103, 1
    %s105 = scalar_select %p102, %s103, %s104
    %p108 = pneg %p102
    %p109 = scmp.eq.s32.totalorder %s9, 3
    %p110 = por %p108, %p109
    %p111 = scmp.ne.s32.totalorder %s103, %s106
    %p112 = scmp.eq.s32.totalorder %s9, 0
    %p113 = por %p111, %p112
    %p114 = scmp.ne.s32.totalorder %s103, %s106
    %p115 = scmp.eq.s32.totalorder %s14, 3
    %p116 = por %p114, %p115
    %p117 = scmp.ne.s32.totalorder %s106, %s107
    %p118 = scmp.eq.s32.totalorder %s14, 0
    %p119 = por %p117, %p118
    %p120 = scmp.ne.s32.totalorder %s106, %s107
    %p121 = scmp.eq.s32.totalorder %s15, 3
    %p122 = por %p120, %p121
    %p124 = scmp.ne.s32.totalorder %s107, %s123
    %p125 = scmp.eq.s32.totalorder %s15, 0
    %p126 = por %p124, %p125
    %p127 = scmp.le.s32.totalorder 1, %s9
    %p128 = scmp.lt.s32.totalorder %s9, 5
    %p129 = pnand %p127, %p128
    %p130 = pneg %p129
    // Predicated region
    $region9: #{deconv_block_forward.3} parent=5 // pred_check
      _
    $region10: #{deconv_block_forward.3} parent=5 // pred_check_branch
      %132 = sbr.rel (%p129) target = $region12
    $region11: #{deconv_block_forward.3} parent=5 // pred_region
      %s133 = ssub.s32 %s9, 1
      // Predicated region
      $region13: #{deconv_block_forward.3} parent=11 // pred_check
        %p134 = pneg %p70
      $region14: #{deconv_block_forward.3} parent=11 // pred_check_branch
        %136 = sbr.rel (%p134) target = $region16
      $region15: #{deconv_block_forward.3} parent=11 // pred_region
        _
      $region16: #{deconv_block_forward.3} parent=11 // pred_fallthru
        _
      // Predicated region
      $region17: #{deconv_block_forward.3} parent=11 // pred_check
        %p137 = pneg %p91
      $region18: #{deconv_block_forward.3} parent=11 // pred_check_branch
        %139 = sbr.rel (%p137) target = $region20
      $region19: #{deconv_block_forward.3} parent=11 // pred_region
        _
      $region20: #{deconv_block_forward.3} parent=11 // pred_fallthru
        _
    $region12: #{deconv_block_forward.3} parent=5 // pred_fallthru
      _
    %p140 = scmp.lt.s32.totalorder %s9, 4
    // Predicated region
    $region21: #{deconv_block_forward.3} parent=5 // pred_check
      %p141 = pneg %p140
    $region22: #{deconv_block_forward.3} parent=5 // pred_check_branch
      %143 = sbr.rel (%p141) target = $region24
    $region23: #{deconv_block_forward.3} parent=5 // pred_region
      // Predicated region
      $region25: #{deconv_block_forward.3} parent=23 // pred_check
        %p144 = pneg %p43
      $region26: #{deconv_block_forward.3} parent=23 // pred_check_branch
        %146 = sbr.rel (%p144) target = $region28
      $region27: #{deconv_block_forward.3} parent=23 // pred_region
        %s147 = smul.u32 2, %s17
        %p148 = scmp.lt.s32.totalorder %s16, 1
        %s149 = scalar_select %p148, %s16, 1
        %p150 = scmp.lt.s32.totalorder %s147, 3
        %s151 = scalar_select %p150, %s147, 3
        %s152 = smul.addr %s149, 4
        %s153 = sadd.s32 %s151, %s152
        %s154 = smul.addr %s153, 8
        %s155 = scalar_lea.vmem %s0, %s154
        %s156 = smul.u32 2, %s17
      $region28: #{deconv_block_forward.3} parent=23 // pred_fallthru
        _
    $region24: #{deconv_block_forward.3} parent=5 // pred_fallthru
      _
    %p157 = scmp.le.s32.totalorder 1, %s9
    %p158 = scmp.lt.s32.totalorder %s9, 5
    %p159 = pnand %p157, %p158
    %p160 = pneg %p159
    // Predicated region
    $region29: #{deconv_block_forward.3} parent=5 // pred_check
      _
    $region30: #{deconv_block_forward.3} parent=5 // pred_check_branch
      %162 = sbr.rel (%p159) target = $region32
    $region31: #{deconv_block_forward.3} parent=5 // pred_region
      %s163 = ssub.s32 %s9, 1
      %s164 = smul.u32 2, %s19
      %p165 = scmp.lt.s32.totalorder %s18, 1
      %s166 = scalar_select %p165, %s18, 1
      %p167 = scmp.lt.s32.totalorder %s164, 3
      %s168 = scalar_select %p167, %s164, 3
      %s169 = smul.addr %s166, 4
      %s170 = sadd.s32 %s168, %s169
      %s171 = smul.addr %s170, 8
      %s172 = scalar_lea.vmem %s0, %s171
      %p173 = pneg %p49
      %p174 = pneg %p46
      %p175 = pneg %p70
      %p176 = pneg %p67
      %p177 = pneg %p91
      %p178 = pneg %p88
      %p179 = pneg %p119
      %p180 = pneg %p116
      %s181 = smul.u32 2, %s19
      %p182 = scmp.lt.s32.totalorder %s18, 1
      %s183 = scalar_select %p182, %s18, 1
      %p184 = scmp.lt.s32.totalorder %s181, 3
      %s185 = scalar_select %p184, %s181, 3
      %s186 = smul.addr %s183, 4
      %s187 = sadd.s32 %s185, %s186
      %s188 = smul.addr %s187, 8
      %s189 = scalar_lea.vmem %s3, %s188
      %s190 = smul.u32 2, %s19
      %p191 = scmp.lt.s32.totalorder %s18, 1
      %s192 = scalar_select %p191, %s18, 1
      %p193 = scmp.lt.s32.totalorder %s190, 3
      %s194 = scalar_select %p193, %s190, 3
      %s195 = smul.addr %s192, 4
      %s196 = sadd.s32 %s194, %s195
      %s197 = smul.addr %s196, 8
      %s198 = scalar_lea.vmem %s0, %s197
      %s199 = smul.u32 2, %s19
      %s200 = smul.u32 2, %s19
      %p201 = scmp.lt.s32.totalorder %s18, 1
      %s202 = scalar_select %p201, %s18, 1
      %p203 = scmp.lt.s32.totalorder %s200, 3
      %s204 = scalar_select %p203, %s200, 3
      %s205 = smul.addr %s202, 4
      %s206 = sadd.s32 %s204, %s205
      %s207 = smul.addr %s206, 8
      %s208 = scalar_lea.vmem %s3, %s207
      %s209 = smul.u32 2, %s19
      %v210 = vld [vmem:[%s198] sm:$0xff]
      %v211 = vld [vmem:[%s198 + $0x8] sm:$0xff]
      %v212 = vld [vmem:[%s1] sm:$0xff]
      %214 = vset.pattern.permute.xlu0 0
      %215 = vperm.xlu0 %214, %v212
      %v216 = vpop.permute.xlu0 %215
      %v218 = vmul.f32 %v210, %v216
      %v219 = vmul.f32 %v211, %v216
      %v220 = vld [vmem:[%s2] sm:$0xff]
      %222 = vset.pattern.permute.xlu0 0
      %223 = vperm.xlu0 %222, %v220
      %v224 = vpop.permute.xlu0 %223
      %v226 = vadd.f32 %v218, %v224
      %v227 = vadd.f32 %v219, %v224
      %v228 = vmax.f32 %v226, 0.0
      %v229 = vmax.f32 %v227, 0.0
      %230 = vst [vmem:[%s208] sm:$0xff] %v228
      %231 = vst [vmem:[%s208 + $0x8] sm:$0xff] %v229
      %s232 = smul.u32 2, %s19
      %p233 = scmp.lt.s32.totalorder %s18, 1
      %s234 = scalar_select %p233, %s18, 1
      %p235 = scmp.lt.s32.totalorder %s232, 3
      %s236 = scalar_select %p235, %s232, 3
      %s237 = smul.addr %s234, 4
      %s238 = sadd.s32 %s236, %s237
      %s239 = smul.addr %s238, 8
      %s240 = scalar_lea.vmem %s3, %s239
      // Predicated region
      $region33: #{deconv_block_forward.3} parent=31 // pred_check
        %p241 = pneg %p116
      $region34: #{deconv_block_forward.3} parent=31 // pred_check_branch
        %243 = sbr.rel (%p241) target = $region36
      $region35: #{deconv_block_forward.3} parent=31 // pred_region
        %s244 = smul.u32 2, %s19
      $region36: #{deconv_block_forward.3} parent=31 // pred_fallthru
        _
    $region32: #{deconv_block_forward.3} parent=5 // pred_fallthru
      _
    %p245 = scmp.le.s32.totalorder 2, %s9
    // Predicated region
    $region37: #{deconv_block_forward.3} parent=5 // pred_check
      %p246 = pneg %p245
    $region38: #{deconv_block_forward.3} parent=5 // pred_check_branch
      %248 = sbr.rel (%p246) target = $region40
    $region39: #{deconv_block_forward.3} parent=5 // pred_region
      %s249 = ssub.s32 %s9, 2
      // Predicated region
      $region41: #{deconv_block_forward.3} parent=39 // pred_check
        %p250 = pneg %p122
      $region42: #{deconv_block_forward.3} parent=39 // pred_check_branch
        %252 = sbr.rel (%p250) target = $region44
      $region43: #{deconv_block_forward.3} parent=39 // pred_region
        %s253 = smul.u32 2, %s21
        %p254 = scmp.lt.s32.totalorder %s20, 1
        %s255 = scalar_select %p254, %s20, 1
        %p256 = scmp.lt.s32.totalorder %s253, 3
        %s257 = scalar_select %p256, %s253, 3
        %s258 = smul.addr %s255, 4
        %s259 = sadd.s32 %s257, %s258
        %s260 = smul.addr %s259, 8
        %s261 = scalar_lea.vmem %s3, %s260
      $region44: #{deconv_block_forward.3} parent=39 // pred_fallthru
        _
    $region40: #{deconv_block_forward.3} parent=5 // pred_fallthru
      _
  $region6: #{deconv_block_forward.3} parent=0 // loop_footer
    %s13 = sadd.s32 1, %s9
  $region7: #{deconv_block_forward.3} parent=0 // loop_footer_branch
    %8 = sbr.rel target = $region3
  $region8: #{deconv_block_forward.3} parent=0 // loop_exit
    _

// kernel: deconv_block_forward.2
$region0: #{deconv_block_forward.2}
  #allocation0 [shape = 'u32[]', space=smem, size = 0x4, offset = 0x4, fixed_abs, tag = 'smem constant byte address 0x4 - core index']
  #allocation1 [shape = 'u32[144,128]{1,0:T(1,128)}', space=vmem, size = 0x12000, scoped, tag = 'internal scratch']
  %s0 = inlined_call_operand.vmem [shape: bf16[2,512,128], index: 0, kind: input, shape index: {}]
  %s1 = inlined_call_operand.vmem [shape: bf16[128,128], index: 1, kind: input, shape index: {}]
  %s2 = inlined_call_operand.vmem [shape: f32[2,8,512], index: 2, kind: output, shape index: {0}]
  %s3 = inlined_call_operand.vmem [shape: f32[4,1,128], index: 3, kind: output, shape index: {1}]
  %s4 = inlined_call_operand.vmem [shape: f32[4,1,128], index: 4, kind: output, shape index: {2}]
  %5 = xla_tuple %s2, %s3, %s4
  %s6 = sld [smem:[#allocation0]]
  $region57: #{deconv_block_forward.2} parent=0
    _
  %s8 = ssub.s32 1, %s6
  %s9 = scalar_select 0, %s8, %s6
  loop: start=0, step=1, limit=6
  $region2: #{deconv_block_forward.2} parent=0 // loop_pre_header
    _
  $region3: #{deconv_block_forward.2} parent=0 // loop_header
    %s11 = sphi 0, %s15
    %p12 = scmp.ge.s32.totalorder %s11, 6
    %s18 = sphi 0, %s30
    %s19 = sphi 0, %s26
    %s20 = sphi 0, %s18
    %s21 = sphi 0, %s19
    %s22 = sphi 0, %s20
    %s23 = sphi 0, %s21
    %s35 = sphi 0, %s37
    %s38 = sphi 0, %s35
    %s39 = sphi 0, %s38
    %s55 = sphi 0, %s39
    %s59 = sphi 0, %s59
    %s61 = sphi 0, %s59
    %s62 = sphi 0, %s61
    %s76 = sphi 0, %s62
    %s84 = sphi 0, %s86
    %s87 = sphi 0, %s84
    %s88 = sphi 0, %s87
    %s104 = sphi 0, %s88
    %s114 = sphi 0, %s116
    %s117 = sphi 0, %s114
    %s118 = sphi 0, %s117
    %s134 = sphi 0, %s118
    %s144 = sphi 0, %s146
    %s147 = sphi 0, %s144
    %s148 = sphi 0, %s147
    %s164 = sphi 0, %s148
  $region4: #{deconv_block_forward.2} parent=0 // loop_header_branch
    %14 = sbr.rel (%p12) target = $region8
  $region5: #{deconv_block_forward.2} parent=0 // loop_body
    %s16 = ssub.s32 %s11, 1
    %s17 = ssub.s32 %s11, 2
    %s24 = sadd.s32 1, %s19
    %p25 = scmp.ge.s32.totalorder %s24, 2
    %s26 = scalar_select %p25, 0, %s24
    %s27 = sadd.s32 1, %s18
    %s28 = scalar_select %p25, %s27, %s18
    %p29 = scmp.ge.s32.totalorder %s28, 2
    %s30 = scalar_select %p29, 0, %s28
    %s31 = ssub.s32 %s18, %s30
    %s32 = ssub.s32 %s19, %s26
    %s33 = sor.u32 %s31, %s32
    %p34 = scmp.eq.s32.totalorder %s33, 0
    %s36 = sadd.s32 %s35, 1
    %s37 = scalar_select %p34, %s35, %s36
    %p40 = pneg %p34
    %p41 = scmp.eq.s32.totalorder %s11, 3
    %p42 = por %p40, %p41
    %p43 = scmp.ne.s32.totalorder %s35, %s38
    %p44 = scmp.eq.s32.totalorder %s11, 0
    %p45 = por %p43, %p44
    %p46 = scmp.ne.s32.totalorder %s35, %s38
    %p47 = scmp.eq.s32.totalorder %s16, 3
    %p48 = por %p46, %p47
    %p49 = scmp.ne.s32.totalorder %s38, %s39
    %p50 = scmp.eq.s32.totalorder %s16, 0
    %p51 = por %p49, %p50
    %p52 = scmp.ne.s32.totalorder %s38, %s39
    %p53 = scmp.eq.s32.totalorder %s17, 3
    %p54 = por %p52, %p53
    %p56 = scmp.ne.s32.totalorder %s39, %s55
    %p57 = scmp.eq.s32.totalorder %s17, 0
    %p58 = por %p56, %p57
    %s60 = sadd.s32 %s59, 1
    %p63 = scmp.eq.s32.totalorder %s11, 3
    %p64 = scmp.ne.s32.totalorder %s59, %s61
    %p65 = scmp.eq.s32.totalorder %s11, 0
    %p66 = por %p64, %p65
    %p67 = scmp.ne.s32.totalorder %s59, %s61
    %p68 = scmp.eq.s32.totalorder %s16, 3
    %p69 = por %p67, %p68
    %p70 = scmp.ne.s32.totalorder %s61, %s62
    %p71 = scmp.eq.s32.totalorder %s16, 0
    %p72 = por %p70, %p71
    %p73 = scmp.ne.s32.totalorder %s61, %s62
    %p74 = scmp.eq.s32.totalorder %s17, 3
    %p75 = por %p73, %p74
    %p77 = scmp.ne.s32.totalorder %s62, %s76
    %p78 = scmp.eq.s32.totalorder %s17, 0
    %p79 = por %p77, %p78
    %s80 = ssub.s32 %s18, %s30
    %s81 = ssub.s32 %s19, %s26
    %s82 = sor.u32 %s80, %s81
    %p83 = scmp.eq.s32.totalorder %s82, 0
    %s85 = sadd.s32 %s84, 1
    %s86 = scalar_select %p83, %s84, %s85
    %p89 = pneg %p83
    %p90 = scmp.eq.s32.totalorder %s11, 3
    %p91 = por %p89, %p90
    %p92 = scmp.ne.s32.totalorder %s84, %s87
    %p93 = scmp.eq.s32.totalorder %s11, 0
    %p94 = por %p92, %p93
    %p95 = scmp.ne.s32.totalorder %s84, %s87
    %p96 = scmp.eq.s32.totalorder %s16, 3
    %p97 = por %p95, %p96
    %p98 = scmp.ne.s32.totalorder %s87, %s88
    %p99 = scmp.eq.s32.totalorder %s16, 0
    %p100 = por %p98, %p99
    %p101 = scmp.ne.s32.totalorder %s87, %s88
    %p102 = scmp.eq.s32.totalorder %s17, 3
    %p103 = por %p101, %p102
    %p105 = scmp.ne.s32.totalorder %s88, %s104
    %p106 = scmp.eq.s32.totalorder %s17, 0
    %p107 = por %p105, %p106
    %s108 = smul.u32 %s18, 2
    %s109 = sadd.s32 %s108, %s19
    %s110 = smul.u32 %s30, 2
    %s111 = sadd.s32 %s110, %s26
    %s112 = ssub.s32 %s109, %s111
    %p113 = scmp.eq.s32.totalorder %s112, 0
    %s115 = sadd.s32 %s114, 1
    %s116 = scalar_select %p113, %s114, %s115
    %p119 = pneg %p113
    %p120 = scmp.eq.s32.totalorder %s11, 3
    %p121 = por %p119, %p120
    %p122 = scmp.ne.s32.totalorder %s114, %s117
    %p123 = scmp.eq.s32.totalorder %s11, 0
    %p124 = por %p122, %p123
    %p125 = scmp.ne.s32.totalorder %s114, %s117
    %p126 = scmp.eq.s32.totalorder %s16, 3
    %p127 = por %p125, %p126
    %p128 = scmp.ne.s32.totalorder %s117, %s118
    %p129 = scmp.eq.s32.totalorder %s16, 0
    %p130 = por %p128, %p129
    %p131 = scmp.ne.s32.totalorder %s117, %s118
    %p132 = scmp.eq.s32.totalorder %s17, 3
    %p133 = por %p131, %p132
    %p135 = scmp.ne.s32.totalorder %s118, %s134
    %p136 = scmp.eq.s32.totalorder %s17, 0
    %p137 = por %p135, %p136
    %s138 = smul.u32 %s18, 2
    %s139 = sadd.s32 %s138, %s19
    %s140 = smul.u32 %s30, 2
    %s141 = sadd.s32 %s140, %s26
    %s142 = ssub.s32 %s139, %s141
    %p143 = scmp.eq.s32.totalorder %s142, 0
    %s145 = sadd.s32 %s144, 1
    %s146 = scalar_select %p143, %s144, %s145
    %p149 = pneg %p143
    %p150 = scmp.eq.s32.totalorder %s11, 3
    %p151 = por %p149, %p150
    %p152 = scmp.ne.s32.totalorder %s144, %s147
    %p153 = scmp.eq.s32.totalorder %s11, 0
    %p154 = por %p152, %p153
    %p155 = scmp.ne.s32.totalorder %s144, %s147
    %p156 = scmp.eq.s32.totalorder %s16, 3
    %p157 = por %p155, %p156
    %p158 = scmp.ne.s32.totalorder %s147, %s148
    %p159 = scmp.eq.s32.totalorder %s16, 0
    %p160 = por %p158, %p159
    %p161 = scmp.ne.s32.totalorder %s147, %s148
    %p162 = scmp.eq.s32.totalorder %s17, 3
    %p163 = por %p161, %p162
    %p165 = scmp.ne.s32.totalorder %s148, %s164
    %p166 = scmp.eq.s32.totalorder %s17, 0
    %p167 = por %p165, %p166
    %p168 = scmp.le.s32.totalorder 1, %s11
    %p169 = scmp.lt.s32.totalorder %s11, 5
    %p170 = pnand %p168, %p169
    %p171 = pneg %p170
    // Predicated region
    $region9: #{deconv_block_forward.2} parent=5 // pred_check
      _
    $region10: #{deconv_block_forward.2} parent=5 // pred_check_branch
      %173 = sbr.rel (%p170) target = $region12
    $region11: #{deconv_block_forward.2} parent=5 // pred_region
      %s174 = ssub.s32 %s11, 1
      // Predicated region
      $region13: #{deconv_block_forward.2} parent=11 // pred_check
        %p175 = pneg %p72
      $region14: #{deconv_block_forward.2} parent=11 // pred_check_branch
        %177 = sbr.rel (%p175) target = $region16
      $region15: #{deconv_block_forward.2} parent=11 // pred_region
        _
      $region16: #{deconv_block_forward.2} parent=11 // pred_fallthru
        _
    $region12: #{deconv_block_forward.2} parent=5 // pred_fallthru
      _
    %p178 = scmp.lt.s32.totalorder %s11, 4
    // Predicated region
    $region17: #{deconv_block_forward.2} parent=5 // pred_check
      %p179 = pneg %p178
    $region18: #{deconv_block_forward.2} parent=5 // pred_check_branch
      %181 = sbr.rel (%p179) target = $region20
    $region19: #{deconv_block_forward.2} parent=5 // pred_region
      // Predicated region
      $region21: #{deconv_block_forward.2} parent=19 // pred_check
        %p182 = pneg %p45
      $region22: #{deconv_block_forward.2} parent=19 // pred_check_branch
        %184 = sbr.rel (%p182) target = $region24
      $region23: #{deconv_block_forward.2} parent=19 // pred_region
        %s185 = smul.u32 32, %s19
        %p186 = scmp.lt.s32.totalorder %s18, 1
        %s187 = scalar_select %p186, %s18, 1
        %p188 = scmp.lt.s32.totalorder %s185, 63
        %s189 = scalar_select %p188, %s185, 63
        %s190 = smul.addr %s187, 64
        %s191 = sadd.s32 %s189, %s190
        %s192 = smul.addr %s191, 4
        %s193 = scalar_lea.vmem %s0, %s192
        %s194 = smul.u32 32, %s19
      $region24: #{deconv_block_forward.2} parent=19 // pred_fallthru
        _
    $region20: #{deconv_block_forward.2} parent=5 // pred_fallthru
      _
    %p195 = scmp.le.s32.totalorder 1, %s11
    %p196 = scmp.lt.s32.totalorder %s11, 5
    %p197 = pnand %p195, %p196
    %p198 = pneg %p197
    // Predicated region
    $region25: #{deconv_block_forward.2} parent=5 // pred_check
      _
    $region26: #{deconv_block_forward.2} parent=5 // pred_check_branch
      %200 = sbr.rel (%p197) target = $region28
    $region27: #{deconv_block_forward.2} parent=5 // pred_region
      %s201 = ssub.s32 %s11, 1
      %s202 = smul.u32 32, %s21
      %p203 = scmp.lt.s32.totalorder %s20, 1
      %s204 = scalar_select %p203, %s20, 1
      %p205 = scmp.lt.s32.totalorder %s202, 63
      %s206 = scalar_select %p205, %s202, 63
      %s207 = smul.addr %s204, 64
      %s208 = sadd.s32 %s206, %s207
      %s209 = smul.addr %s208, 4
      %s210 = scalar_lea.vmem %s0, %s209
      %p211 = pneg %p51
      %p212 = pneg %p48
      %p213 = pneg %p72
      %p214 = pneg %p69
      %p215 = pneg %p100
      %p216 = pneg %p97
      %s217 = smul.u32 2, %s21
      %p218 = scmp.lt.s32.totalorder %s20, 1
      %s219 = scalar_select %p218, %s20, 1
      %p220 = scmp.lt.s32.totalorder %s217, 3
      %s221 = scalar_select %p220, %s217, 3
      %s222 = smul.addr %s219, 4
      %s223 = sadd.s32 %s221, %s222
      %s224 = smul.addr %s223, 8
      %s225 = scalar_lea.vmem %s2, %s224
      %p226 = pneg %p130
      %p227 = pneg %p127
      %s228 = smul.u32 %s20, 2
      %s229 = sadd.s32 %s228, %s21
      %p230 = scmp.lt.s32.totalorder %s229, 3
      %s231 = scalar_select %p230, %s229, 3
      %s232 = scalar_lea.vmem %s3, %s231
      %p233 = pneg %p160
      %p234 = pneg %p157
      %s235 = smul.u32 %s20, 2
      %s236 = sadd.s32 %s235, %s21
      %p237 = scmp.lt.s32.totalorder %s236, 3
      %s238 = scalar_select %p237, %s236, 3
      %s239 = scalar_lea.vmem %s4, %s238
      %s240 = smul.u32 32, %s21
      %p241 = scmp.lt.s32.totalorder %s20, 1
      %s242 = scalar_select %p241, %s20, 1
      %p243 = scmp.lt.s32.totalorder %s240, 63
      %s244 = scalar_select %p243, %s240, 63
      %s245 = smul.addr %s242, 64
      %s246 = sadd.s32 %s244, %s245
      %s247 = smul.addr %s246, 4
      %s248 = scalar_lea.vmem %s0, %s247
      %s249 = smul.u32 32, %s21
      %s250 = smul.u32 2, %s21
      %p251 = scmp.lt.s32.totalorder %s20, 1
      %s252 = scalar_select %p251, %s20, 1
      %p253 = scmp.lt.s32.totalorder %s250, 3
      %s254 = scalar_select %p253, %s250, 3
      %s255 = smul.addr %s252, 4
      %s256 = sadd.s32 %s254, %s255
      %s257 = smul.addr %s256, 8
      %s258 = scalar_lea.vmem %s2, %s257
      %s259 = smul.u32 2, %s21
      %s260 = smul.u32 %s20, 2
      %s261 = sadd.s32 %s260, %s21
      %p262 = scmp.lt.s32.totalorder %s261, 3
      %s263 = scalar_select %p262, %s261, 3
      %s264 = scalar_lea.vmem %s3, %s263
      %s265 = smul.u32 %s20, 2
      %s266 = sadd.s32 %s265, %s21
      %s267 = smul.u32 %s20, 2
      %s268 = sadd.s32 %s267, %s21
      %p269 = scmp.lt.s32.totalorder %s268, 3
      %s270 = scalar_select %p269, %s268, 3
      %s271 = scalar_lea.vmem %s4, %s270
      %s272 = smul.u32 %s20, 2
      %s273 = sadd.s32 %s272, %s21
      %v275 = vld [vmem:[%s248] sm:$0xf]
      %v276 = vld [vmem:[%s248 + $0x4] sm:$0xf]
      %v277 = vld [vmem:[%s248 + $0x8] sm:$0xf]
      %v278 = vld [vmem:[%s248 + $0xc] sm:$0xf]
      %v279 = vld [vmem:[%s248 + $0x10] sm:$0xf]
      %v280 = vld [vmem:[%s248 + $0x14] sm:$0xf]
      %v281 = vld [vmem:[%s248 + $0x18] sm:$0xf]
      %v282 = vld [vmem:[%s248 + $0x1c] sm:$0xf]
      %v283 = vld [vmem:[%s248 + $0x20] sm:$0xf]
      %v284 = vld [vmem:[%s248 + $0x24] sm:$0xf]
      %v285 = vld [vmem:[%s248 + $0x28] sm:$0xf]
      %v286 = vld [vmem:[%s248 + $0x2c] sm:$0xf]
      %v287 = vld [vmem:[%s248 + $0x30] sm:$0xf]
      %v288 = vld [vmem:[%s248 + $0x34] sm:$0xf]
      %v289 = vld [vmem:[%s248 + $0x38] sm:$0xf]
      %v290 = vld [vmem:[%s248 + $0x3c] sm:$0xf]
      %v291 = vld [vmem:[%s248 + $0x40] sm:$0xf]
      %v292 = vld [vmem:[%s248 + $0x44] sm:$0xf]
      %v293 = vld [vmem:[%s248 + $0x48] sm:$0xf]
      %v294 = vld [vmem:[%s248 + $0x4c] sm:$0xf]
      %v295 = vld [vmem:[%s248 + $0x50] sm:$0xf]
      %v296 = vld [vmem:[%s248 + $0x54] sm:$0xf]
      %v297 = vld [vmem:[%s248 + $0x58] sm:$0xf]
      %v298 = vld [vmem:[%s248 + $0x5c] sm:$0xf]
      %v299 = vld [vmem:[%s248 + $0x60] sm:$0xf]
      %v300 = vld [vmem:[%s248 + $0x64] sm:$0xf]
      %v301 = vld [vmem:[%s248 + $0x68] sm:$0xf]
      %v302 = vld [vmem:[%s248 + $0x6c] sm:$0xf]
      %v303 = vld [vmem:[%s248 + $0x70] sm:$0xf]
      %v304 = vld [vmem:[%s248 + $0x74] sm:$0xf]
      %v305 = vld [vmem:[%s248 + $0x78] sm:$0xf]
      %v306 = vld [vmem:[%s248 + $0x7c] sm:$0xf]
      %v307 = vld [vmem:[%s1] sm:$0xf]
      %v308 = vld [vmem:[%s1 + $0x4] sm:$0xf]
      %v309 = vld [vmem:[%s1 + $0x8] sm:$0xf]
      %v310 = vld [vmem:[%s1 + $0xc] sm:$0xf]
      %v311 = vld [vmem:[%s1 + $0x10] sm:$0xf]
      %v312 = vld [vmem:[%s1 + $0x14] sm:$0xf]
      %v313 = vld [vmem:[%s1 + $0x18] sm:$0xf]
      %v314 = vld [vmem:[%s1 + $0x1c] sm:$0xf]
      %v315 = vld [vmem:[%s1 + $0x20] sm:$0xf]
      %v316 = vld [vmem:[%s1 + $0x24] sm:$0xf]
      %v317 = vld [vmem:[%s1 + $0x28] sm:$0xf]
      %v318 = vld [vmem:[%s1 + $0x2c] sm:$0xf]
      %v319 = vld [vmem:[%s1 + $0x30] sm:$0xf]
      %v320 = vld [vmem:[%s1 + $0x34] sm:$0xf]
      %v321 = vld [vmem:[%s1 + $0x38] sm:$0xf]
      %v322 = vld [vmem:[%s1 + $0x3c] sm:$0xf]
      %v355 = vunpack.c.l.b16 %v275
      %v356 = vunpack.c.l.b16 %v276
      %v357 = vunpack.c.l.b16 %v277
      %v358 = vunpack.c.l.b16 %v278
      %v359 = vunpack.c.l.b16 %v279
      %v360 = vunpack.c.l.b16 %v280
      %v361 = vunpack.c.l.b16 %v281
      %v362 = vunpack.c.l.b16 %v282
      %v363 = vunpack.c.l.b16 %v283
      %v364 = vunpack.c.l.b16 %v284
      %v365 = vunpack.c.l.b16 %v285
      %v366 = vunpack.c.l.b16 %v286
      %v367 = vunpack.c.l.b16 %v287
      %v368 = vunpack.c.l.b16 %v288
      %v369 = vunpack.c.l.b16 %v289
      %v370 = vunpack.c.l.b16 %v290
      %v371 = vunpack.c.l.b16 %v291
      %v372 = vunpack.c.l.b16 %v292
      %v373 = vunpack.c.l.b16 %v293
      %v374 = vunpack.c.l.b16 %v294
      %v375 = vunpack.c.l.b16 %v295
      %v376 = vunpack.c.l.b16 %v296
      %v377 = vunpack.c.l.b16 %v297
      %v378 = vunpack.c.l.b16 %v298
      %v379 = vunpack.c.l.b16 %v299
      %v380 = vunpack.c.l.b16 %v300
      %v381 = vunpack.c.l.b16 %v301
      %v382 = vunpack.c.l.b16 %v302
      %v383 = vunpack.c.l.b16 %v303
      %v384 = vunpack.c.l.b16 %v304
      %v385 = vunpack.c.l.b16 %v305
      %v386 = vunpack.c.l.b16 %v306
      %v387 = vpack.c.b16 %v356, %v355
      %v388 = vpack.c.b16 %v358, %v357
      %v389 = vpack.c.b16 %v360, %v359
      %v390 = vpack.c.b16 %v362, %v361
      %v391 = vpack.c.b16 %v364, %v363
      %v392 = vpack.c.b16 %v366, %v365
      %v393 = vpack.c.b16 %v368, %v367
      %v394 = vpack.c.b16 %v370, %v369
      %v395 = vpack.c.b16 %v372, %v371
      %v396 = vpack.c.b16 %v374, %v373
      %v397 = vpack.c.b16 %v376, %v375
      %v398 = vpack.c.b16 %v378, %v377
      %v399 = vpack.c.b16 %v380, %v379
      %v400 = vpack.c.b16 %v382, %v381
      %v401 = vpack.c.b16 %v384, %v383
      %v402 = vpack.c.b16 %v386, %v385
      %v435 = vunpack.c.l.b16 %v307
      %v436 = vunpack.c.l.b16 %v308
      %v437 = vunpack.c.l.b16 %v309
      %v438 = vunpack.c.l.b16 %v310
      %v439 = vunpack.c.l.b16 %v311
      %v440 = vunpack.c.l.b16 %v312
      %v441 = vunpack.c.l.b16 %v313
      %v442 = vunpack.c.l.b16 %v314
      %v443 = vunpack.c.l.b16 %v315
      %v444 = vunpack.c.l.b16 %v316
      %v445 = vunpack.c.l.b16 %v317
      %v446 = vunpack.c.l.b16 %v318
      %v447 = vunpack.c.l.b16 %v319
      %v448 = vunpack.c.l.b16 %v320
      %v449 = vunpack.c.l.b16 %v321
      %v450 = vunpack.c.l.b16 %v322
      %v451 = vpack.c.b16 %v436, %v435
      %v452 = vpack.c.b16 %v438, %v437
      %v453 = vpack.c.b16 %v440, %v439
      %v454 = vpack.c.b16 %v442, %v441
      %v455 = vpack.c.b16 %v444, %v443
      %v456 = vpack.c.b16 %v446, %v445
      %v457 = vpack.c.b16 %v448, %v447
      %v458 = vpack.c.b16 %v450, %v449
      %467 = vmatprep.subr.bf16.mxu0 0
      %468 = vmatpush1.bf16.msra.mxu0 %v458
      %469 = vmatprep.subr.bf16.mxu0 0
      %470 = vmatpush1.bf16.msra.mxu0 %v457
      %471 = vmatprep.subr.bf16.mxu0 0
      %472 = vmatpush1.bf16.msra.mxu0 %v456
      %473 = vmatprep.subr.bf16.mxu0 0
      %474 = vmatpush1.bf16.msra.mxu0 %v455
      %475 = vmatprep.subr.bf16.mxu0 0
      %476 = vmatpush1.bf16.msra.mxu0 %v454
      %477 = vmatprep.subr.bf16.mxu0 0
      %478 = vmatpush1.bf16.msra.mxu0 %v453
      %479 = vmatprep.subr.bf16.mxu0 0
      %480 = vmatpush1.bf16.msra.mxu0 %v452
      %481 = vmatprep.subr.bf16.mxu0 0
      %482 = vmatpush1.bf16.msra.mxu0 %v451
      %483 = vmatprep.subr.bf16.mxu0 0
      %484 = vmatpush2.bf16.msra.mxu0 0
      %485 = vmatprep.subr.bf16.mxu0 0
      %486 = vmatpush2.bf16.msra.mxu0 0
      %487 = vmatprep.subr.bf16.mxu0 0
      %488 = vmatpush2.bf16.msra.mxu0 0
      %489 = vmatprep.subr.bf16.mxu0 0
      %490 = vmatpush2.bf16.msra.mxu0 0
      %491 = vmatprep.subr.bf16.mxu0 0
      %492 = vmatpush2.bf16.msra.mxu0 0
      %493 = vmatprep.subr.bf16.mxu0 0
      %494 = vmatpush2.bf16.msra.mxu0 0
      %495 = vmatprep.subr.bf16.mxu0 0
      %496 = vmatpush2.bf16.msra.mxu0 0
      %497 = vmatprep.subr.bf16.mxu0 0
      %498 = vmatpush2.bf16.msra.mxu0 0
      %499 = vmatprep.mubr.bf16.mxu0 0
      %500 = vmatmul.mubr.bf16.gmra.mxu0 %v387
      %v501 = vpop.f32.mrf.mxu0
      %v502 = vadd.f32 0.0, %v501
      %v503 = vpop.f32.mrf.mxu0
      %v504 = vpop.f32.mrf.mxu0
      %v505 = vadd.f32 0.0, %v504
      %v506 = vpop.f32.mrf.mxu0
      %507 = vmatprep.mubr.bf16.mxu0 0
      %508 = vmatmul.mubr.bf16.gmra.mxu0 %v388
      %v509 = vpop.f32.mrf.mxu0
      %v510 = vadd.f32 0.0, %v509
      %v511 = vpop.f32.mrf.mxu0
      %v512 = vpop.f32.mrf.mxu0
      %v513 = vadd.f32 0.0, %v512
      %v514 = vpop.f32.mrf.mxu0
      %515 = vmatprep.mubr.bf16.mxu0 0
      %516 = vmatmul.mubr.bf16.gmra.mxu0 %v389
      %v517 = vpop.f32.mrf.mxu0
      %v518 = vadd.f32 0.0, %v517
      %v519 = vpop.f32.mrf.mxu0
      %v520 = vpop.f32.mrf.mxu0
      %v521 = vadd.f32 0.0, %v520
      %v522 = vpop.f32.mrf.mxu0
      %523 = vmatprep.mubr.bf16.mxu0 0
      %524 = vmatmul.mubr.bf16.gmra.mxu0 %v390
      %v525 = vpop.f32.mrf.mxu0
      %v526 = vadd.f32 0.0, %v525
      %v527 = vpop.f32.mrf.mxu0
      %v528 = vpop.f32.mrf.mxu0
      %v529 = vadd.f32 0.0, %v528
      %v530 = vpop.f32.mrf.mxu0
      %531 = vmatprep.mubr.bf16.mxu0 0
      %532 = vmatmul.mubr.bf16.gmra.mxu0 %v391
      %v533 = vpop.f32.mrf.mxu0
      %v534 = vadd.f32 0.0, %v533
      %v535 = vpop.f32.mrf.mxu0
      %v536 = vpop.f32.mrf.mxu0
      %v537 = vadd.f32 0.0, %v536
      %v538 = vpop.f32.mrf.mxu0
      %539 = vmatprep.mubr.bf16.mxu0 0
      %540 = vmatmul.mubr.bf16.gmra.mxu0 %v392
      %v541 = vpop.f32.mrf.mxu0
      %v542 = vadd.f32 0.0, %v541
      %v543 = vpop.f32.mrf.mxu0
      %v544 = vpop.f32.mrf.mxu0
      %v545 = vadd.f32 0.0, %v544
      %v546 = vpop.f32.mrf.mxu0
      %547 = vmatprep.mubr.bf16.mxu0 0
      %548 = vmatmul.mubr.bf16.gmra.mxu0 %v393
      %v549 = vpop.f32.mrf.mxu0
      %v550 = vadd.f32 0.0, %v549
      %v551 = vpop.f32.mrf.mxu0
      %v552 = vpop.f32.mrf.mxu0
      %v553 = vadd.f32 0.0, %v552
      %v554 = vpop.f32.mrf.mxu0
      %555 = vmatprep.mubr.bf16.mxu0 0
      %556 = vmatmul.mubr.bf16.gmra.mxu0 %v394
      %v557 = vpop.f32.mrf.mxu0
      %v558 = vadd.f32 0.0, %v557
      %v559 = vpop.f32.mrf.mxu0
      %v560 = vpop.f32.mrf.mxu0
      %v561 = vadd.f32 0.0, %v560
      %v562 = vpop.f32.mrf.mxu0
      %563 = vmatprep.mubr.bf16.mxu0 0
      %564 = vmatmul.mubr.bf16.gmra.mxu0 %v395
      %v565 = vpop.f32.mrf.mxu0
      %v566 = vadd.f32 0.0, %v565
      %v567 = vpop.f32.mrf.mxu0
      %v568 = vpop.f32.mrf.mxu0
      %v569 = vadd.f32 0.0, %v568
      %v570 = vpop.f32.mrf.mxu0
      %571 = vmatprep.mubr.bf16.mxu0 0
      %572 = vmatmul.mubr.bf16.gmra.mxu0 %v396
      %v573 = vpop.f32.mrf.mxu0
      %v574 = vadd.f32 0.0, %v573
      %v575 = vpop.f32.mrf.mxu0
      %v576 = vpop.f32.mrf.mxu0
      %v577 = vadd.f32 0.0, %v576
      %v578 = vpop.f32.mrf.mxu0
      %579 = vmatprep.mubr.bf16.mxu0 0
      %580 = vmatmul.mubr.bf16.gmra.mxu0 %v397
      %v581 = vpop.f32.mrf.mxu0
      %v582 = vadd.f32 0.0, %v581
      %v583 = vpop.f32.mrf.mxu0
      %v584 = vpop.f32.mrf.mxu0
      %v585 = vadd.f32 0.0, %v584
      %v586 = vpop.f32.mrf.mxu0
      %587 = vmatprep.mubr.bf16.mxu0 0
      %588 = vmatmul.mubr.bf16.gmra.mxu0 %v398
      %v589 = vpop.f32.mrf.mxu0
      %v590 = vadd.f32 0.0, %v589
      %v591 = vpop.f32.mrf.mxu0
      %v592 = vpop.f32.mrf.mxu0
      %v593 = vadd.f32 0.0, %v592
      %v594 = vpop.f32.mrf.mxu0
      %595 = vmatprep.mubr.bf16.mxu0 0
      %596 = vmatmul.mubr.bf16.gmra.mxu0 %v399
      %v597 = vpop.f32.mrf.mxu0
      %v598 = vadd.f32 0.0, %v597
      %v599 = vpop.f32.mrf.mxu0
      %v600 = vpop.f32.mrf.mxu0
      %v601 = vadd.f32 0.0, %v600
      %v602 = vpop.f32.mrf.mxu0
      %603 = vmatprep.mubr.bf16.mxu0 0
      %604 = vmatmul.mubr.bf16.gmra.mxu0 %v400
      %v605 = vpop.f32.mrf.mxu0
      %v606 = vadd.f32 0.0, %v605
      %v607 = vpop.f32.mrf.mxu0
      %v608 = vpop.f32.mrf.mxu0
      %v609 = vadd.f32 0.0, %v608
      %v610 = vpop.f32.mrf.mxu0
      %611 = vmatprep.mubr.bf16.mxu0 0
      %612 = vmatmul.mubr.bf16.gmra.mxu0 %v401
      %v613 = vpop.f32.mrf.mxu0
      %v614 = vadd.f32 0.0, %v613
      %v615 = vpop.f32.mrf.mxu0
      %v616 = vpop.f32.mrf.mxu0
      %v617 = vadd.f32 0.0, %v616
      %v618 = vpop.f32.mrf.mxu0
      %619 = vmatprep.mubr.bf16.mxu0 0
      %620 = vmatmul.mubr.bf16.gmra.mxu0 %v402
      %v621 = vpop.f32.mrf.mxu0
      %v622 = vadd.f32 0.0, %v621
      %v623 = vpop.f32.mrf.mxu0
      %v624 = vpop.f32.mrf.mxu0
      %v625 = vadd.f32 0.0, %v624
      %v626 = vpop.f32.mrf.mxu0
      %627 = vdwg.mxu0
      %628 = vxpose.xlu0.b32.start [1/16] %v502, 128
      %629 = vxpose.xlu0.b32.cont [2/16] %v505, 128
      %630 = vxpose.xlu0.b32.cont [3/16] %v510, 128
      %631 = vxpose.xlu0.b32.cont [4/16] %v513, 128
      %632 = vxpose.xlu0.b32.cont [5/16] %v518, 128
      %633 = vxpose.xlu0.b32.cont [6/16] %v521, 128
      %634 = vxpose.xlu0.b32.cont [7/16] %v526, 128
      %635 = vxpose.xlu0.b32.cont [8/16] %v529, 128
      %636 = vxpose.xlu0.b32.cont [9/16] %v534, 128
      %637 = vxpose.xlu0.b32.cont [10/16] %v537, 128
      %638 = vxpose.xlu0.b32.cont [11/16] %v542, 128
      %639 = vxpose.xlu0.b32.cont [12/16] %v545, 128
      %640 = vxpose.xlu0.b32.cont [13/16] %v550, 128
      %641 = vxpose.xlu0.b32.cont [14/16] %v553, 128
      %642 = vxpose.xlu0.b32.cont [15/16] %v558, 128
      %643 = vxpose.xlu0.b32.end [16/16] %v561, 128
      %v644 = vpop.trf.xlu0
      %v645 = vpop.trf.xlu0
      %v646 = vpop.trf.xlu0
      %v647 = vpop.trf.xlu0
      %v648 = vpop.trf.xlu0
      %v649 = vpop.trf.xlu0
      %v650 = vpop.trf.xlu0
      %v651 = vpop.trf.xlu0
      %v652 = vpop.trf.xlu0
      %v653 = vpop.trf.xlu0
      %v654 = vpop.trf.xlu0
      %v655 = vpop.trf.xlu0
      %v656 = vpop.trf.xlu0
      %v657 = vpop.trf.xlu0
      %v658 = vpop.trf.xlu0
      %v659 = vpop.trf.xlu0
      %660 = vxpose.xlu0.b32.start [1/16] %v566, 128
      %661 = vxpose.xlu0.b32.cont [2/16] %v569, 128
      %662 = vxpose.xlu0.b32.cont [3/16] %v574, 128
      %663 = vxpose.xlu0.b32.cont [4/16] %v577, 128
      %664 = vxpose.xlu0.b32.cont [5/16] %v582, 128
      %665 = vxpose.xlu0.b32.cont [6/16] %v585, 128
      %666 = vxpose.xlu0.b32.cont [7/16] %v590, 128
      %667 = vxpose.xlu0.b32.cont [8/16] %v593, 128
      %668 = vxpose.xlu0.b32.cont [9/16] %v598, 128
      %669 = vxpose.xlu0.b32.cont [10/16] %v601, 128
      %670 = vxpose.xlu0.b32.cont [11/16] %v606, 128
      %671 = vxpose.xlu0.b32.cont [12/16] %v609, 128
      %672 = vxpose.xlu0.b32.cont [13/16] %v614, 128
      %673 = vxpose.xlu0.b32.cont [14/16] %v617, 128
      %674 = vxpose.xlu0.b32.cont [15/16] %v622, 128
      %675 = vxpose.xlu0.b32.end [16/16] %v625, 128
      %v676 = vpop.trf.xlu0
      %v677 = vpop.trf.xlu0
      %v678 = vpop.trf.xlu0
      %v679 = vpop.trf.xlu0
      %v680 = vpop.trf.xlu0
      %v681 = vpop.trf.xlu0
      %v682 = vpop.trf.xlu0
      %v683 = vpop.trf.xlu0
      %v684 = vpop.trf.xlu0
      %v685 = vpop.trf.xlu0
      %v686 = vpop.trf.xlu0
      %v687 = vpop.trf.xlu0
      %v688 = vpop.trf.xlu0
      %v689 = vpop.trf.xlu0
      %v690 = vpop.trf.xlu0
      %v691 = vpop.trf.xlu0
      %692 = vst [vmem:[%s258] sm:$0xff] %v644
      %693 = vst [vmem:[%s258 + $0x8] sm:$0xff] %v676
      %v694 = vadd.f32 %v502, %v505
      %v695 = vadd.f32 %v694, %v510
      %v696 = vadd.f32 %v695, %v513
      %v697 = vadd.f32 %v696, %v518
      %v698 = vadd.f32 %v697, %v521
      %v699 = vadd.f32 %v698, %v526
      %v700 = vadd.f32 %v699, %v529
      %v701 = vadd.f32 %v700, %v534
      %v702 = vadd.f32 %v701, %v537
      %v703 = vadd.f32 %v702, %v542
      %v704 = vadd.f32 %v703, %v545
      %v705 = vadd.f32 %v704, %v550
      %v706 = vadd.f32 %v705, %v553
      %v707 = vadd.f32 %v706, %v558
      %v708 = vadd.f32 %v707, %v561
      %v709 = vadd.f32 %v708, %v566
      %v710 = vadd.f32 %v709, %v569
      %v711 = vadd.f32 %v710, %v574
      %v712 = vadd.f32 %v711, %v577
      %v713 = vadd.f32 %v712, %v582
      %v714 = vadd.f32 %v713, %v585
      %v715 = vadd.f32 %v714, %v590
      %v716 = vadd.f32 %v715, %v593
      %v717 = vadd.f32 %v716, %v598
      %v718 = vadd.f32 %v717, %v601
      %v719 = vadd.f32 %v718, %v606
      %v720 = vadd.f32 %v719, %v609
      %v721 = vadd.f32 %v720, %v614
      %v722 = vadd.f32 %v721, %v617
      %v723 = vadd.f32 %v722, %v622
      %v724 = vadd.f32 %v723, %v625
      %v725 = vrot.slane %v724, 4
      %v726 = vadd.f32 %v724, %v725
      %v727 = vrot.slane %v726, 2
      %v728 = vadd.f32 %v726, %v727
      %v729 = vrot.slane %v728, 1
      %v730 = vadd.f32 %v728, %v729
      %731 = vst [vmem:[%s264] sm:$0x1] %v730
      %v732 = vmul.f32 %v502, %v502
      %v733 = vmul.f32 %v505, %v505
      %v734 = vmul.f32 %v510, %v510
      %v735 = vmul.f32 %v513, %v513
      %v736 = vmul.f32 %v518, %v518
      %v737 = vmul.f32 %v521, %v521
      %v738 = vmul.f32 %v526, %v526
      %v739 = vmul.f32 %v529, %v529
      %v740 = vmul.f32 %v534, %v534
      %v741 = vmul.f32 %v537, %v537
      %v742 = vmul.f32 %v542, %v542
      %v743 = vmul.f32 %v545, %v545
      %v744 = vmul.f32 %v550, %v550
      %v745 = vmul.f32 %v553, %v553
      %v746 = vmul.f32 %v558, %v558
      %v747 = vmul.f32 %v561, %v561
      %v748 = vmul.f32 %v566, %v566
      %v749 = vmul.f32 %v569, %v569
      %v750 = vmul.f32 %v574, %v574
      %v751 = vmul.f32 %v577, %v577
      %v752 = vmul.f32 %v582, %v582
      %v753 = vmul.f32 %v585, %v585
      %v754 = vmul.f32 %v590, %v590
      %v755 = vmul.f32 %v593, %v593
      %v756 = vmul.f32 %v598, %v598
      %v757 = vmul.f32 %v601, %v601
      %v758 = vmul.f32 %v606, %v606
      %v759 = vmul.f32 %v609, %v609
      %v760 = vmul.f32 %v614, %v614
      %v761 = vmul.f32 %v617, %v617
      %v762 = vmul.f32 %v622, %v622
      %v763 = vmul.f32 %v625, %v625
      %v764 = vadd.f32 %v732, %v733
      %v765 = vadd.f32 %v764, %v734
      %v766 = vadd.f32 %v765, %v735
      %v767 = vadd.f32 %v766, %v736
      %v768 = vadd.f32 %v767, %v737
      %v769 = vadd.f32 %v768, %v738
      %v770 = vadd.f32 %v769, %v739
      %v771 = vadd.f32 %v770, %v740
      %v772 = vadd.f32 %v771, %v741
      %v773 = vadd.f32 %v772, %v742
      %v774 = vadd.f32 %v773, %v743
      %v775 = vadd.f32 %v774, %v744
      %v776 = vadd.f32 %v775, %v745
      %v777 = vadd.f32 %v776, %v746
      %v778 = vadd.f32 %v777, %v747
      %v779 = vadd.f32 %v778, %v748
      %v780 = vadd.f32 %v779, %v749
      %v781 = vadd.f32 %v780, %v750
      %v782 = vadd.f32 %v781, %v751
      %v783 = vadd.f32 %v782, %v752
      %v784 = vadd.f32 %v783, %v753
      %v785 = vadd.f32 %v784, %v754
      %v786 = vadd.f32 %v785, %v755
      %v787 = vadd.f32 %v786, %v756
      %v788 = vadd.f32 %v787, %v757
      %v789 = vadd.f32 %v788, %v758
      %v790 = vadd.f32 %v789, %v759
      %v791 = vadd.f32 %v790, %v760
      %v792 = vadd.f32 %v791, %v761
      %v793 = vadd.f32 %v792, %v762
      %v794 = vadd.f32 %v793, %v763
      %v795 = vrot.slane %v794, 4
      %v796 = vadd.f32 %v794, %v795
      %v797 = vrot.slane %v796, 2
      %v798 = vadd.f32 %v796, %v797
      %v799 = vrot.slane %v798, 1
      %v800 = vadd.f32 %v798, %v799
      %801 = vst [vmem:[%s271] sm:$0x1] %v800
      %s802 = smul.u32 2, %s21
      %p803 = scmp.lt.s32.totalorder %s20, 1
      %s804 = scalar_select %p803, %s20, 1
      %p805 = scmp.lt.s32.totalorder %s802, 3
      %s806 = scalar_select %p805, %s802, 3
      %s807 = smul.addr %s804, 4
      %s808 = sadd.s32 %s806, %s807
      %s809 = smul.addr %s808, 8
      %s810 = scalar_lea.vmem %s2, %s809
      %s811 = smul.u32 %s20, 2
      %s812 = sadd.s32 %s811, %s21
      %p813 = scmp.lt.s32.totalorder %s812, 3
      %s814 = scalar_select %p813, %s812, 3
      %s815 = scalar_lea.vmem %s3, %s814
      %s816 = smul.u32 %s20, 2
      %s817 = sadd.s32 %s816, %s21
      %p818 = scmp.lt.s32.totalorder %s817, 3
      %s819 = scalar_select %p818, %s817, 3
      %s820 = scalar_lea.vmem %s4, %s819
      // Predicated region
      $region29: #{deconv_block_forward.2} parent=27 // pred_check
        %p821 = pneg %p97
      $region30: #{deconv_block_forward.2} parent=27 // pred_check_branch
        %823 = sbr.rel (%p821) target = $region32
      $region31: #{deconv_block_forward.2} parent=27 // pred_region
        %s824 = smul.u32 2, %s21
      $region32: #{deconv_block_forward.2} parent=27 // pred_fallthru
        _
      // Predicated region
      $region33: #{deconv_block_forward.2} parent=27 // pred_check
        %p825 = pneg %p127
      $region34: #{deconv_block_forward.2} parent=27 // pred_check_branch
        %827 = sbr.rel (%p825) target = $region36
      $region35: #{deconv_block_forward.2} parent=27 // pred_region
        %s828 = smul.u32 %s20, 2
        %s829 = sadd.s32 %s828, %s21
      $region36: #{deconv_block_forward.2} parent=27 // pred_fallthru
        _
      // Predicated region
      $region37: #{deconv_block_forward.2} parent=27 // pred_check
        %p830 = pneg %p157
      $region38: #{deconv_block_forward.2} parent=27 // pred_check_branch
        %832 = sbr.rel (%p830) target = $region40
      $region39: #{deconv_block_forward.2} parent=27 // pred_region
        %s833 = smul.u32 %s20, 2
        %s834 = sadd.s32 %s833, %s21
      $region40: #{deconv_block_forward.2} parent=27 // pred_fallthru
        _
    $region28: #{deconv_block_forward.2} parent=5 // pred_fallthru
      _
    %p835 = scmp.le.s32.totalorder 2, %s11
    // Predicated region
    $region41: #{deconv_block_forward.2} parent=5 // pred_check
      %p836 = pneg %p835
    $region42: #{deconv_block_forward.2} parent=5 // pred_check_branch
      %838 = sbr.rel (%p836) target = $region44
    $region43: #{deconv_block_forward.2} parent=5 // pred_region
      %s839 = ssub.s32 %s11, 2
      // Predicated region
      $region45: #{deconv_block_forward.2} parent=43 // pred_check
        %p840 = pneg %p103
      $region46: #{deconv_block_forward.2} parent=43 // pred_check_branch
        %842 = sbr.rel (%p840) target = $region48
      $region47: #{deconv_block_forward.2} parent=43 // pred_region
        %s843 = smul.u32 2, %s23
        %p844 = scmp.lt.s32.totalorder %s22, 1
        %s845 = scalar_select %p844, %s22, 1
        %p846 = scmp.lt.s32.totalorder %s843, 3
        %s847 = scalar_select %p846, %s843, 3
        %s848 = smul.addr %s845, 4
        %s849 = sadd.s32 %s847, %s848
        %s850 = smul.addr %s849, 8
        %s851 = scalar_lea.vmem %s2, %s850
      $region48: #{deconv_block_forward.2} parent=43 // pred_fallthru
        _
      // Predicated region
      $region49: #{deconv_block_forward.2} parent=43 // pred_check
        %p852 = pneg %p133
      $region50: #{deconv_block_forward.2} parent=43 // pred_check_branch
        %854 = sbr.rel (%p852) target = $region52
      $region51: #{deconv_block_forward.2} parent=43 // pred_region
        %s855 = smul.u32 %s22, 2
        %s856 = sadd.s32 %s855, %s23
        %p857 = scmp.lt.s32.totalorder %s856, 3
        %s858 = scalar_select %p857, %s856, 3
        %s859 = scalar_lea.vmem %s3, %s858
      $region52: #{deconv_block_forward.2} parent=43 // pred_fallthru
        _
      // Predicated region
      $region53: #{deconv_block_forward.2} parent=43 // pred_check
        %p860 = pneg %p163
      $region54: #{deconv_block_forward.2} parent=43 // pred_check_branch
        %862 = sbr.rel (%p860) target = $region56
      $region55: #{deconv_block_forward.2} parent=43 // pred_region
        %s863 = smul.u32 %s22, 2
        %s864 = sadd.s32 %s863, %s23
        %p865 = scmp.lt.s32.totalorder %s864, 3
        %s866 = scalar_select %p865, %s864, 3
        %s867 = scalar_lea.vmem %s4, %s866
      $region56: #{deconv_block_forward.2} parent=43 // pred_fallthru
        _
    $region44: #{deconv_block_forward.2} parent=5 // pred_fallthru
      _
  $region6: #{deconv_block_forward.2} parent=0 // loop_footer
    %s15 = sadd.s32 1, %s11
  $region7: #{deconv_block_forward.2} parent=0 // loop_footer_branch
    %10 = sbr.rel target = $region3
  $region8: #{deconv_block_forward.2} parent=0 // loop_exit
    _

</llo_original>
